<compile_context>
chip_gen: v7x
topology: tpu7x:2x2x1
jax: 0.10.0
libtpu: 0.0.40
codegen_flags: <defaults>
</compile_context>

<pallas_src>
import numpy as np
import jax
import jax.numpy as jnp
from jax.experimental import pallas as pl
from jax.experimental.pallas import tpu as pltpu

# ----- static problem dims from the module spec --------------------------------
CIN, COUT = 2, 3
KH = KW = 3
STRIDE, PAD = 2, 1
HIN = WIN = 5
HOUT = (HIN - 1) * STRIDE - 2 * PAD + KH          # 9
WOUT = HOUT                                        # 9
HW = HOUT * WOUT                                   # 81
D_IN = CIN * HIN * WIN                             # 50
D_ACT = COUT * HW                                  # 243
D_ACT_PAD = 256                                    # lane-padded activation width
LIN_IN, LIN_OUT = 9, 20
D_Y8 = COUT * HOUT * LIN_OUT                       # 540
D_Y8_PAD = 640                                     # lane-padded y8 width
CPOOL = 8                                          # channel axis padded to 8

VMEM = pl.BlockSpec(memory_space=pltpu.MemorySpace.VMEM)
SMEM = pl.BlockSpec(memory_space=pltpu.MemorySpace.SMEM)


# ----------------------------------------------------------------- the kernel --
def _fused_kernel(inv_ref, x0_ref, x1_ref, x1t_ref, wconv_ref, bpool_ref,
                  rows_ref, wlin_ref, y5_ref, y7_ref, y8_ref):
    f32 = jnp.float32
    inv_count = inv_ref[0, 0]                        # 1 / (N * H * W)

    x0 = x0_ref[...]                                 # (N, 50)
    x1 = x1_ref[...]                                 # (N, 256)  BN input (padded)
    x1t = x1t_ref[...]                               # (N, 256)  spatially transposed copy

    bconv = rows_ref[0:1, :D_ACT_PAD]                # (1, 256)
    gamma = rows_ref[1:2, :D_ACT_PAD]                # (1, 256)
    beta = rows_ref[2:3, :D_ACT_PAD]                 # (1, 256)
    blin = rows_ref[3:4, :]                          # (1, 640)

    # ConvTranspose2d as a single f32 MXU matmul against the dense (50,256) map.
    x0c = jnp.dot(x0, wconv_ref[...], preferred_element_type=f32) + bconv

    # BatchNorm2d, training-mode batch stats (biased variance).  Channel sums
    # and broadcast via ONE (8,256) 0/1 pool matrix (rank-3 factorization of
    # the former dense 243x243 mask); contraction on its lane axis for pooling,
    # on its channel axis for broadcasting.
    bpool = bpool_ref[...]                           # (8, 256)
    rsum = jnp.sum(x1, axis=0, keepdims=True)        # (1, 256)
    csum = jax.lax.dot_general(rsum, bpool, (((1,), (1,)), ((), ())),
                               preferred_element_type=f32)           # (1, 8)
    mean = jnp.dot(csum, bpool, preferred_element_type=f32) * inv_count
    cent = x1 - mean
    rsq = jnp.sum(cent * cent, axis=0, keepdims=True)
    csq = jax.lax.dot_general(rsq, bpool, (((1,), (1,)), ((), ())),
                              preferred_element_type=f32)
    var = jnp.dot(csq, bpool, preferred_element_type=f32) * inv_count
    scale = jax.lax.rsqrt(var + 1e-5) * gamma                         # EUP rsqrt
    x1b = cent * scale + beta

    # y0 = BN(x1 with its two 9x9 spatial dims swapped).  BN batch statistics
    # are invariant to a within-channel spatial permutation, so re-apply the
    # same per-channel affine to the pre-transposed copy (replaces the old
    # 243x243 permutation matmul + its 236 KB constant).
    y0 = (x1t - mean) * scale + beta

    # Elementwise graph:
    #   y1 = x0c; y2 = y1 + x1b; y3 = -y1; y4 = y0 + y3
    #   y5 = y0 + y2; y6 = y4 + y0; y7 = x1b + y6
    y5 = y0 + (x0c + x1b)
    y7 = x1b + (y0 - x0c) + y0
    y5_ref[...] = y5
    y7_ref[...] = y7

    # Linear(9, 20) over the last spatial dim as one block matmul.
    # wlin stored bf16 in HBM (dominant constant halved); f32 MXU accumulate.
    y8_ref[...] = jnp.dot(y5.astype(jnp.bfloat16), wlin_ref[...],
                          preferred_element_type=f32) + blin


# -------------------------------------------------------- parameters & consts --
def init_params(key):
    ks = jax.random.split(key, 6)
    return {
        "ct_w": 0.1 * jax.random.normal(ks[0], (CIN, COUT, KH, KW), jnp.float32),
        "ct_b": 0.1 * jax.random.normal(ks[1], (COUT,), jnp.float32),
        "bn_g": 1.0 + 0.1 * jax.random.normal(ks[2], (COUT,), jnp.float32),
        "bn_b": 0.1 * jax.random.normal(ks[3], (COUT,), jnp.float32),
        "lin_w": 0.1 * jax.random.normal(ks[4], (LIN_OUT, LIN_IN), jnp.float32),
        "lin_b": 0.1 * jax.random.normal(ks[5], (LIN_OUT,), jnp.float32),
    }


def prepare_constants(params):
    """One-time weight preprocessing done OUTSIDE the jitted forward."""
    w = np.asarray(params["ct_w"], np.float32)                  # (Cin, Cout, 3, 3)

    # ConvTranspose2d as a dense (Cin*H*W, Cout*Ho*Wo) map:
    #   out[co, oh, ow] += x[ci, ih, iw] * w[ci, co, kh, kw],  oh = ih*s - p + kh.
    ih = np.arange(HIN)[:, None, None]
    kh = np.arange(KH)[None, :, None]
    oh = np.arange(HOUT)[None, None, :]
    mh = (oh == ih * STRIDE - PAD + kh).astype(np.float32)      # (5, 3, 9)
    wconv = np.einsum("iokl,hka,wlb->ihwoab", w, mh, mh).reshape(D_IN, D_ACT)
    wconv_p = np.zeros((D_IN, D_ACT_PAD), np.float32)
    wconv_p[:, :D_ACT] = wconv

    bconv = np.repeat(np.asarray(params["ct_b"], np.float32), HW)
    gamma = np.repeat(np.asarray(params["bn_g"], np.float32), HW)
    beta = np.repeat(np.asarray(params["bn_b"], np.float32), HW)

    # Linear(9, 20) over the last dim as a (243, 540) block matrix, lane-padded.
    lin_w = np.asarray(params["lin_w"], np.float32)             # (20, 9)
    i_c = np.eye(COUT, dtype=np.float32)
    i_h = np.eye(HOUT, dtype=np.float32)
    wlin = np.einsum("ow,cd,he->chwdeo", lin_w, i_c, i_h).reshape(D_ACT, D_Y8)
    wlin_p = np.zeros((D_ACT_PAD, D_Y8_PAD), np.float32)
    wlin_p[:D_ACT, :D_Y8] = wlin
    blin = np.tile(np.asarray(params["lin_b"], np.float32), COUT * HOUT)  # (540,)

    # Packed small row constants: rows = [bconv, gamma, beta, blin], lane-padded.
    rows = np.zeros((4, D_Y8_PAD), np.float32)
    rows[0, :D_ACT] = bconv
    rows[1, :D_ACT] = gamma
    rows[2, :D_ACT] = beta
    rows[3, :D_Y8] = blin

    # (8, 256) 0/1 channel pool/broadcast matrix (pad rows/lanes stay zero).
    bpool = np.zeros((CPOOL, D_ACT_PAD), np.float32)
    lane_c = np.arange(D_ACT) // HW
    bpool[lane_c, np.arange(D_ACT)] = 1.0

    return {
        "wconv": jnp.asarray(wconv_p, jnp.float32),
        "bpool": jnp.asarray(bpool, jnp.float32),
        "rows": jnp.asarray(rows, jnp.float32),
        "wlin": jnp.asarray(wlin_p, jnp.bfloat16),   # bf16 weights, f32 accumulate
    }


# ------------------------------------------------------------------ forward ----
@jax.jit
def model_forward(consts, x0, x1):
    n = x0.shape[0]
    pad = D_ACT_PAD - D_ACT
    x0f = x0.reshape(n, D_IN)                                        # free view
    x1f = jnp.pad(x1.reshape(n, D_ACT), ((0, 0), (0, pad)))
    x1tf = jnp.pad(jnp.swapaxes(x1, 2, 3).reshape(n, D_ACT), ((0, 0), (0, pad)))
    inv = jnp.full((1, 1), 1.0 / (n * HW), jnp.float32)              # SMEM scalar

    y5p, y7p, y8p = pl.pallas_call(
        _fused_kernel,
        out_shape=(
            jax.ShapeDtypeStruct((n, D_ACT_PAD), jnp.float32),
            jax.ShapeDtypeStruct((n, D_ACT_PAD), jnp.float32),
            jax.ShapeDtypeStruct((n, D_Y8_PAD), jnp.float32),
        ),
        in_specs=[SMEM, VMEM, VMEM, VMEM, VMEM, VMEM, VMEM, VMEM],
        out_specs=(VMEM, VMEM, VMEM),
    )(inv, x0f, x1f, x1tf, consts["wconv"], consts["bpool"],
      consts["rows"], consts["wlin"])

    y5 = y5p[:, :D_ACT].reshape(n, COUT, HOUT, WOUT)
    y7 = y7p[:, :D_ACT].reshape(n, COUT, HOUT, WOUT)
    y8 = y8p[:, :D_Y8].reshape(n, COUT, HOUT, LIN_OUT)
    return y5, y7, y8


# ------------------------------------------------------ pure-numpy reference ---
def reference_forward(params, x0, x1):
    x0 = np.asarray(x0, np.float32)
    x1 = np.asarray(x1, np.float32)
    w = np.asarray(params["ct_w"], np.float32)
    b = np.asarray(params["ct_b"], np.float32)
    g = np.asarray(params["bn_g"], np.float32)
    bb = np.asarray(params["bn_b"], np.float32)
    lw = np.asarray(params["lin_w"], np.float32)
    lb = np.asarray(params["lin_b"], np.float32)
    n = x0.shape[0]

    xc = np.zeros((n, COUT, HOUT, WOUT), np.float32)
    for ci in range(CIN):
        for ih in range(HIN):
            for iw in range(WIN):
                for kh in range(KH):
                    for kw in range(KW):
                        oh = ih * STRIDE - PAD + kh
                        ow = iw * STRIDE - PAD + kw
                        if 0 <= oh < HOUT and 0 <= ow < WOUT:
                            xc[:, :, oh, ow] += (x0[:, ci, ih, iw][:, None]
                                                 * w[ci, :, kh, kw][None, :])
    xc += b[None, :, None, None]

    mean = x1.mean(axis=(0, 2, 3), keepdims=True)
    var = x1.var(axis=(0, 2, 3), keepdims=True)            # biased (training mode)
    x1b = ((x1 - mean) / np.sqrt(var + 1e-5) * g[None, :, None, None]
           + bb[None, :, None, None])

    y0 = np.swapaxes(x1b, 2, 3)
    y2 = xc + x1b
    y4 = y0 - xc
    y5 = y0 + y2
    y6 = y4 + y0
    y7 = x1b + y6
    y8 = np.einsum("nchw,ow->ncho", y5, lw) + lb[None, None, None, :]
    return y5, y7, y8


if __name__ == "__main__":
    key = jax.random.PRNGKey(0)
    kx0, kx1, kp = jax.random.split(key, 3)
    x0 = jax.random.normal(kx0, (2, CIN, HIN, WIN), jnp.float32)     # (2, 2, 5, 5)
    x1 = jax.random.normal(kx1, (2, COUT, HOUT, WOUT), jnp.float32)  # (2, 3, 9, 9)

    params = init_params(kp)
    consts = prepare_constants(params)

    y5, y7, y8 = model_forward(consts, x0, x1)
    jax.block_until_ready((y5, y7, y8))

    assert y5.shape == (2, COUT, HOUT, WOUT)
    assert y7.shape == (2, COUT, HOUT, WOUT)
    assert y8.shape == (2, COUT, HOUT, LIN_OUT)

    r5, r7, r8 = reference_forward(params, x0, x1)
    assert np.allclose(np.asarray(y5), r5, rtol=1e-4, atol=1e-4)
    assert np.allclose(np.asarray(y7), r7, rtol=1e-4, atol=1e-4)
    # y8 path uses bf16 weights/activations on the MXU (f32 accumulate).
    assert np.allclose(np.asarray(y8), r8, rtol=5e-2, atol=5e-2)

    print("KERNEL_OK")
</pallas_src>

<mosaic_0001>
module attributes {stable_mosaic.version = 11 : i64} {
  func.func @_fused_kernel(%arg0: memref<1x1xf32, #tpu.memory_space<smem>>, %arg1: memref<2x50xf32, #tpu.memory_space<vmem>>, %arg2: memref<2x256xf32, #tpu.memory_space<vmem>>, %arg3: memref<2x256xf32, #tpu.memory_space<vmem>>, %arg4: memref<50x256xf32, #tpu.memory_space<vmem>>, %arg5: memref<8x256xf32, #tpu.memory_space<vmem>>, %arg6: memref<4x640xf32, #tpu.memory_space<vmem>>, %arg7: memref<256x640xbf16, #tpu.memory_space<vmem>>, %arg8: memref<2x256xf32, #tpu.memory_space<vmem>>, %arg9: memref<2x256xf32, #tpu.memory_space<vmem>>, %arg10: memref<2x640xf32, #tpu.memory_space<vmem>>) attributes {dimension_semantics = [], scalar_prefetch = 0 : i64, scratch_operands = 0 : i64, tpu.core_type = #tpu.core_type<tc>} {
    %c0 = arith.constant 0 : index
    %c0_0 = arith.constant 0 : index
    %0 = memref.load %arg0[%c0, %c0_0] : memref<1x1xf32, #tpu.memory_space<smem>>
    %c0_1 = arith.constant 0 : index
    %c0_2 = arith.constant 0 : index
    %1 = vector.load %arg1[%c0_1, %c0_2] : memref<2x50xf32, #tpu.memory_space<vmem>>, vector<2x50xf32>
    %c0_3 = arith.constant 0 : index
    %c0_4 = arith.constant 0 : index
    %2 = vector.load %arg2[%c0_3, %c0_4] : memref<2x256xf32, #tpu.memory_space<vmem>>, vector<2x256xf32>
    %c0_5 = arith.constant 0 : index
    %c0_6 = arith.constant 0 : index
    %3 = vector.load %arg3[%c0_5, %c0_6] : memref<2x256xf32, #tpu.memory_space<vmem>>, vector<2x256xf32>
    %c0_7 = arith.constant 0 : index
    %c0_8 = arith.constant 0 : index
    %4 = vector.load %arg6[%c0_7, %c0_8] : memref<4x640xf32, #tpu.memory_space<vmem>>, vector<1x256xf32>
    %c1 = arith.constant 1 : index
    %c0_9 = arith.constant 0 : index
    %5 = vector.load %arg6[%c1, %c0_9] : memref<4x640xf32, #tpu.memory_space<vmem>>, vector<1x256xf32>
    %c2 = arith.constant 2 : index
    %c0_10 = arith.constant 0 : index
    %6 = vector.load %arg6[%c2, %c0_10] : memref<4x640xf32, #tpu.memory_space<vmem>>, vector<1x256xf32>
    %c3 = arith.constant 3 : index
    %c0_11 = arith.constant 0 : index
    %7 = vector.load %arg6[%c3, %c0_11] : memref<4x640xf32, #tpu.memory_space<vmem>>, vector<1x640xf32>
    %c0_12 = arith.constant 0 : index
    %c0_13 = arith.constant 0 : index
    %8 = vector.load %arg4[%c0_12, %c0_13] : memref<50x256xf32, #tpu.memory_space<vmem>>, vector<50x256xf32>
    %cst = arith.constant dense<0.000000e+00> : vector<2x256xf32>
    %9 = tpu.matmul %1, %8, %cst {dimension_numbers = #tpu.dot_dimension_numbers<[1], [0], [0], [1], [0, 0, 1, 1], [], []>} : vector<2x50xf32>, vector<50x256xf32>, vector<2x256xf32> -> vector<2x256xf32>
    %10 = vector.broadcast %4 : vector<1x256xf32> to vector<2x256xf32>
    %11 = arith.addf %9, %10 : vector<2x256xf32>
    %c0_14 = arith.constant 0 : index
    %c0_15 = arith.constant 0 : index
    %12 = vector.load %arg5[%c0_14, %c0_15] : memref<8x256xf32, #tpu.memory_space<vmem>>, vector<8x256xf32>
    %cst_16 = arith.constant dense<0.000000e+00> : vector<256xf32>
    %13 = vector.multi_reduction <add>, %2, %cst_16 [0] : vector<2x256xf32> to vector<256xf32>
    %14 = vector.shape_cast %13 : vector<256xf32> to vector<1x256xf32>
    %cst_17 = arith.constant dense<0.000000e+00> : vector<1x8xf32>
    %15 = tpu.matmul %14, %12, %cst_17 {dimension_numbers = #tpu.dot_dimension_numbers<[1], [1], [0], [0], [0, 0, 1, 0], [], []>} : vector<1x256xf32>, vector<8x256xf32>, vector<1x8xf32> -> vector<1x8xf32>
    %cst_18 = arith.constant dense<0.000000e+00> : vector<1x256xf32>
    %16 = tpu.matmul %15, %12, %cst_18 {dimension_numbers = #tpu.dot_dimension_numbers<[1], [0], [0], [1], [0, 0, 1, 1], [], []>} : vector<1x8xf32>, vector<8x256xf32>, vector<1x256xf32> -> vector<1x256xf32>
    %17 = vector.broadcast %0 : f32 to vector<1x256xf32>
    %18 = arith.mulf %16, %17 : vector<1x256xf32>
    %19 = vector.broadcast %18 : vector<1x256xf32> to vector<2x256xf32>
    %20 = arith.subf %2, %19 : vector<2x256xf32>
    %21 = arith.mulf %20, %20 : vector<2x256xf32>
    %cst_19 = arith.constant dense<0.000000e+00> : vector<256xf32>
    %22 = vector.multi_reduction <add>, %21, %cst_19 [0] : vector<2x256xf32> to vector<256xf32>
    %23 = vector.shape_cast %22 : vector<256xf32> to vector<1x256xf32>
    %cst_20 = arith.constant dense<0.000000e+00> : vector<1x8xf32>
    %24 = tpu.matmul %23, %12, %cst_20 {dimension_numbers = #tpu.dot_dimension_numbers<[1], [1], [0], [0], [0, 0, 1, 0], [], []>} : vector<1x256xf32>, vector<8x256xf32>, vector<1x8xf32> -> vector<1x8xf32>
    %cst_21 = arith.constant dense<0.000000e+00> : vector<1x256xf32>
    %25 = tpu.matmul %24, %12, %cst_21 {dimension_numbers = #tpu.dot_dimension_numbers<[1], [0], [0], [1], [0, 0, 1, 1], [], []>} : vector<1x8xf32>, vector<8x256xf32>, vector<1x256xf32> -> vector<1x256xf32>
    %26 = vector.broadcast %0 : f32 to vector<1x256xf32>
    %27 = arith.mulf %25, %26 : vector<1x256xf32>
    %cst_22 = arith.constant 9.99999974E-6 : f32
    %28 = vector.broadcast %cst_22 : f32 to vector<1x256xf32>
    %29 = arith.addf %27, %28 : vector<1x256xf32>
    %30 = math.rsqrt %29 : vector<1x256xf32>
    %31 = arith.mulf %30, %5 : vector<1x256xf32>
    %32 = vector.broadcast %31 : vector<1x256xf32> to vector<2x256xf32>
    %33 = arith.mulf %20, %32 : vector<2x256xf32>
    %34 = vector.broadcast %6 : vector<1x256xf32> to vector<2x256xf32>
    %35 = arith.addf %33, %34 : vector<2x256xf32>
    %36 = vector.broadcast %18 : vector<1x256xf32> to vector<2x256xf32>
    %37 = arith.subf %3, %36 : vector<2x256xf32>
    %38 = vector.broadcast %31 : vector<1x256xf32> to vector<2x256xf32>
    %39 = arith.mulf %37, %38 : vector<2x256xf32>
    %40 = vector.broadcast %6 : vector<1x256xf32> to vector<2x256xf32>
    %41 = arith.addf %39, %40 : vector<2x256xf32>
    %42 = arith.addf %11, %35 : vector<2x256xf32>
    %43 = arith.addf %41, %42 : vector<2x256xf32>
    %44 = arith.subf %41, %11 : vector<2x256xf32>
    %45 = arith.addf %35, %44 : vector<2x256xf32>
    %46 = arith.addf %45, %41 : vector<2x256xf32>
    %c0_23 = arith.constant 0 : index
    %c0_24 = arith.constant 0 : index
    %47 = vector.load %arg8[%c0_23, %c0_24] : memref<2x256xf32, #tpu.memory_space<vmem>>, vector<2x256xf32>
    tpu.vector_store %arg8[%c0_23, %c0_24], %43 {strides = array<i32>} : memref<2x256xf32, #tpu.memory_space<vmem>>, vector<2x256xf32>,
    %c0_25 = arith.constant 0 : index
    %c0_26 = arith.constant 0 : index
    %48 = vector.load %arg9[%c0_25, %c0_26] : memref<2x256xf32, #tpu.memory_space<vmem>>, vector<2x256xf32>
    tpu.vector_store %arg9[%c0_25, %c0_26], %46 {strides = array<i32>} : memref<2x256xf32, #tpu.memory_space<vmem>>, vector<2x256xf32>,
    %49 = arith.truncf %43 : vector<2x256xf32> to vector<2x256xbf16>
    %c0_27 = arith.constant 0 : index
    %c0_28 = arith.constant 0 : index
    %50 = vector.load %arg7[%c0_27, %c0_28] : memref<256x640xbf16, #tpu.memory_space<vmem>>, vector<256x640xbf16>
    %cst_29 = arith.constant dense<0.000000e+00> : vector<2x640xf32>
    %51 = tpu.matmul %49, %50, %cst_29 {dimension_numbers = #tpu.dot_dimension_numbers<[1], [0], [0], [1], [0, 0, 1, 1], [], []>} : vector<2x256xbf16>, vector<256x640xbf16>, vector<2x640xf32> -> vector<2x640xf32>
    %52 = vector.broadcast %7 : vector<1x640xf32> to vector<2x640xf32>
    %53 = arith.addf %51, %52 : vector<2x640xf32>
    %c0_30 = arith.constant 0 : index
    %c0_31 = arith.constant 0 : index
    %54 = vector.load %arg10[%c0_30, %c0_31] : memref<2x640xf32, #tpu.memory_space<vmem>>, vector<2x640xf32>
    tpu.vector_store %arg10[%c0_30, %c0_31], %53 {strides = array<i32>} : memref<2x640xf32, #tpu.memory_space<vmem>>, vector<2x640xf32>,
    return
  }
}

</mosaic_0001>

<llo_original>
// kernel: model_forward.1
$region0: #{model_forward.1}
  #allocation0 [shape = 'u32[]', space=smem, size = 0x4, offset = 0x4, fixed_abs, tag = 'smem constant byte address 0x4 - core index']
  #allocation1 [shape = 'u32[144,128]{1,0:T(1,128)}', space=vmem, size = 0x12000, scoped, tag = 'internal scratch']
  #allocation2 [shape = 'f32[1,1]{1,0:T(1,128)S(6)}', space=smem, size = 0x200, scoped, tag = 'scoped memory for model_forward.1']
  %s0 = inlined_call_operand.<no memory space> [shape: f32[1,1], index: 0, kind: input, shape index: {}]
  %s1 = inlined_call_operand.vmem [shape: f32[2,50], index: 1, kind: input, shape index: {}]
  %s2 = inlined_call_operand.vmem [shape: f32[2,256], index: 2, kind: input, shape index: {}]
  %s3 = inlined_call_operand.vmem [shape: f32[2,256], index: 3, kind: input, shape index: {}]
  %s4 = inlined_call_operand.vmem [shape: f32[50,256], index: 4, kind: input, shape index: {}]
  %s5 = inlined_call_operand.vmem [shape: f32[8,256], index: 5, kind: input, shape index: {}]
  %s6 = inlined_call_operand.vmem [shape: f32[4,640], index: 6, kind: input, shape index: {}]
  %s7 = inlined_call_operand.hbm [shape: bf16[256,640], index: 7, kind: input, shape index: {}]
  %s8 = inlined_call_operand.vmem [shape: f32[2,256], index: 8, kind: output, shape index: {0}]
  %s9 = inlined_call_operand.vmem [shape: f32[2,256], index: 9, kind: output, shape index: {1}]
  %s10 = inlined_call_operand.vmem [shape: f32[2,640], index: 10, kind: output, shape index: {2}]
  %11 = xla_tuple %s8, %s9, %s10
  %s12 = sld [smem:[#allocation0]]
  $region62: #{model_forward.1} parent=0
    _
  %s14 = ssub.s32 1, %s12
  %s15 = scalar_select 0, %s14, %s12
  %16 = sst [smem:[#allocation2]] %s0
  $region1: #{model_forward.1} parent=0
    #allocation3 [shape = 'u8[327680]{0}', space=vmem, size = 0x50000, scoped, tag = 'input window, operand 7, single buffered']
    #allocation4 [shape = 's32[1]{0}', space=sflag, size = 0x4, scoped, tag = 'scoped memory for model_forward.1']
    %17 = vsyncpa [#allocation4], 0
    // Predicated region
    $region2: #{model_forward.1} parent=1 // pred_check
      _
    $region3: #{model_forward.1} parent=1 // pred_check_branch
      %19 = sbr.rel (0) target = $region5
    $region4: #{model_forward.1} parent=1 // pred_region
      _
    $region5: #{model_forward.1} parent=1 // pred_fallthru
      _
    // Predicated region
    $region6: #{model_forward.1} parent=1 // pred_check
      _
    $region7: #{model_forward.1} parent=1 // pred_check_branch
      %21 = sbr.rel (0) target = $region9
    $region8: #{model_forward.1} parent=1 // pred_region
      _
    $region9: #{model_forward.1} parent=1 // pred_fallthru
      _
    // Predicated region
    $region10: #{model_forward.1} parent=1 // pred_check
      _
    $region11: #{model_forward.1} parent=1 // pred_check_branch
      %23 = sbr.rel (0) target = $region13
    $region12: #{model_forward.1} parent=1 // pred_region
      _
    $region13: #{model_forward.1} parent=1 // pred_fallthru
      _
    // Predicated region
    $region14: #{model_forward.1} parent=1 // pred_check
      _
    $region15: #{model_forward.1} parent=1 // pred_check_branch
      %25 = sbr.rel (0) target = $region17
    $region16: #{model_forward.1} parent=1 // pred_region
      _
    $region17: #{model_forward.1} parent=1 // pred_fallthru
      _
    // Predicated region
    $region18: #{model_forward.1} parent=1 // pred_check
      _
    $region19: #{model_forward.1} parent=1 // pred_check_branch
      %27 = sbr.rel (0) target = $region21
    $region20: #{model_forward.1} parent=1 // pred_region
      _
    $region21: #{model_forward.1} parent=1 // pred_fallthru
      _
    // Predicated region
    $region22: #{model_forward.1} parent=1 // pred_check
      _
    $region23: #{model_forward.1} parent=1 // pred_check_branch
      %29 = sbr.rel (0) target = $region25
    $region24: #{model_forward.1} parent=1 // pred_region
      _
    $region25: #{model_forward.1} parent=1 // pred_fallthru
      _
    // Predicated region
    $region26: #{model_forward.1} parent=1 // pred_check
      _
    $region27: #{model_forward.1} parent=1 // pred_check_branch
      %31 = sbr.rel (0) target = $region29
    $region28: #{model_forward.1} parent=1 // pred_region
      _
    $region29: #{model_forward.1} parent=1 // pred_fallthru
      _
    // Predicated region
    $region30: #{model_forward.1} parent=1 // pred_check
      _
    $region31: #{model_forward.1} parent=1 // pred_check_branch
      %33 = sbr.rel (0) target = $region33
    $region32: #{model_forward.1} parent=1 // pred_region
      %s35 = ssub.s32 10240, 10240
      %36 = vsyncadd [#allocation4], %s35
      %s37 = sshll.u32 [#allocation3], 4
      %s38 = int_to_ptr.vmem [resolvable:$true] %s37
      %43 = dma.hbm_to_vmem [thread:$0]  %s7, 10240, %s38, [#allocation4], 320, 320, 20
    $region33: #{model_forward.1} parent=1 // pred_fallthru
      _
    // Predicated region
    $region34: #{model_forward.1} parent=1 // pred_check
      _
    $region35: #{model_forward.1} parent=1 // pred_check_branch
      %45 = sbr.rel (0) target = $region37
    $region36: #{model_forward.1} parent=1 // pred_region
      %46 = dma.done [#allocation4], 10240
    $region37: #{model_forward.1} parent=1 // pred_fallthru
      _
    %s48 = sld [smem:[#allocation2]]
    %v49 = vld [vmem:[%s1] sm:$0x3]
    %v50 = vld [vmem:[%s2] sm:$0xf]
    %v51 = vld [vmem:[%s3] sm:$0xf]
    %v52 = vld [vmem:[%s6] ss:$4 sm:$0x3]
    %s53 = scalar_lea.vmem %s6, 1
    %v54 = vld [vmem:[%s53] ss:$4 sm:$0x3]
    %s55 = scalar_lea.vmem %s6, 2
    %v56 = vld [vmem:[%s55] ss:$4 sm:$0x3]
    %s57 = scalar_lea.vmem %s6, 3
    %v58 = vld [vmem:[%s57] ss:$4 sm:$0x1f]
    %v59 = vld [vmem:[%s4] sm:$0xff]
    %v60 = vld [vmem:[%s4 + $0x8] sm:$0xff]
    %v61 = vld [vmem:[%s4 + $0x10] sm:$0xff]
    %v62 = vld [vmem:[%s4 + $0x18] sm:$0xff]
    %v63 = vld [vmem:[%s4 + $0x20] sm:$0xff]
    %v64 = vld [vmem:[%s4 + $0x28] sm:$0xff]
    %v65 = vld [vmem:[%s4 + $0x30] sm:$0xff]
    %v66 = vld [vmem:[%s4 + $0x38] sm:$0xff]
    %v67 = vld [vmem:[%s4 + $0x40] sm:$0xff]
    %v68 = vld [vmem:[%s4 + $0x48] sm:$0xff]
    %v69 = vld [vmem:[%s4 + $0x50] sm:$0xff]
    %v70 = vld [vmem:[%s4 + $0x58] sm:$0xff]
    %v71 = vld [vmem:[%s4 + $0x60] sm:$0x3]
    %v72 = vld [vmem:[%s4 + $0x68] sm:$0x3]
    %v74 = vlaneseq
    %v75 = vshrl.u32 %v74, 7
    %v76 = vsub.s32 0, %v75
    %v77 = vrot.slane %v52, %v76
    %v78 = vlaneseq
    %v79 = vshrl.u32 %v78, 7
    %v80 = vsub.s32 1, %v79
    %v81 = vrot.slane %v52, %v80
    %vm84 = vcmask 408576
    %v86 = vsel %vm84, %v49, 0
    %vm88 = vcmask 1041408
    %v90 = vsel %vm88, %v71, 0
    %v93 = vsel %vm88, %v72, 0
    %95 = vmatprep.subr.mxu0 %v60
    %96 = vmatpush1.msra.mxu0 %v59
    %97 = vmatprep.subr.mxu0 %v62
    %98 = vmatpush1.msra.mxu0 %v61
    %99 = vmatprep.subr.mxu0 %v64
    %100 = vmatpush1.msra.mxu0 %v63
    %101 = vmatprep.subr.mxu0 %v66
    %102 = vmatpush1.msra.mxu0 %v65
    %103 = vmatprep.subr.mxu0 %v68
    %104 = vmatpush1.msra.mxu0 %v67
    %105 = vmatprep.subr.mxu0 %v70
    %106 = vmatpush1.msra.mxu0 %v69
    %107 = vmatprep.subr.mxu0 %v93
    %108 = vmatpush1.msra.mxu0 %v90
    %109 = vmatprep.subr.mxu0 0.0
    %110 = vmatpush1.msra.mxu0 0.0
    %111 = vmatprep.subr.mxu0 0.0
    %112 = vmatpush1.msra.mxu0 0.0
    %113 = vmatprep.subr.mxu0 0.0
    %114 = vmatpush1.msra.mxu0 0.0
    %115 = vmatprep.subr.mxu0 0.0
    %116 = vmatpush1.msra.mxu0 0.0
    %117 = vmatprep.subr.mxu0 0.0
    %118 = vmatpush1.msra.mxu0 0.0
    %119 = vmatprep.subr.mxu0 0.0
    %120 = vmatpush1.msra.mxu0 0.0
    %121 = vmatprep.subr.mxu0 0.0
    %122 = vmatpush1.msra.mxu0 0.0
    %123 = vmatprep.subr.mxu0 0.0
    %124 = vmatpush1.msra.mxu0 0.0
    %125 = vmatprep.subr.mxu0 0.0
    %126 = vmatpush1.msra.mxu0 0.0
    %127 = vmatprep.subr.mxu0 0.0
    %128 = vmatpush1.msra.mxu0 0.0
    %129 = vmatprep.subr.mxu0 0.0
    %130 = vmatpush1.msra.mxu0 0.0
    %131 = vmatprep.subr.mxu0 0.0
    %132 = vmatpush1.msra.mxu0 0.0
    %133 = vmatprep.subr.mxu0 0.0
    %134 = vmatpush1.msra.mxu0 0.0
    %135 = vmatprep.subr.mxu0 0.0
    %136 = vmatpush1.msra.mxu0 0.0
    %137 = vmatprep.subr.mxu0 0.0
    %138 = vmatpush1.msra.mxu0 0.0
    %139 = vmatprep.subr.mxu0 0.0
    %140 = vmatpush1.msra.mxu0 0.0
    %141 = vmatprep.subr.mxu0 0.0
    %142 = vmatpush1.msra.mxu0 0.0
    %143 = vmatprep.subr.mxu0 0.0
    %144 = vmatpush1.msra.mxu0 0.0
    %145 = vmatprep.subr.mxu0 0.0
    %146 = vmatpush1.msra.mxu0 0.0
    %147 = vmatprep.subr.mxu0 0.0
    %148 = vmatpush1.msra.mxu0 0.0
    %149 = vmatprep.subr.mxu0 0.0
    %150 = vmatpush1.msra.mxu0 0.0
    %151 = vmatprep.subr.mxu0 0.0
    %152 = vmatpush1.msra.mxu0 0.0
    %153 = vmatprep.subr.mxu0 0.0
    %154 = vmatpush1.msra.mxu0 0.0
    %155 = vmatprep.subr.mxu0 0.0
    %156 = vmatpush1.msra.mxu0 0.0
    %157 = vmatprep.subr.mxu0 0.0
    %158 = vmatpush1.msra.mxu0 0.0
    %159 = vmatprep.mubr.f32.mxu0 0.0
    %160 = vmatmul.mubr.f32.gmra.mrb[0].mxu0 %v86
    %v161 = vpop.f32.mrb[0].mxu0
    %v162 = vadd.f32 %v77, %v161
    %v163 = vpop.f32.mrb[0].mxu0
    %v164 = vadd.f32 %v81, %v163
    %165 = vdwg.mxu0
    %v166 = vld [vmem:[%s5] sm:$0xff]
    %v167 = vld [vmem:[%s5 + $0x8] sm:$0xff]
    %v170 = vunpack.c.l.s4 1983009808
    %v171 = vunpack.c.0.s8 %v170
    %v172 = vlaneseq
    %v173 = vshrl.u32 %v172, 7
    %v174 = vsub.s32 %v171, %v173
    %v175 = vrot.slane %v50, %v174
    %v176 = vcombine.high %v175, %v175
    %v179 = vsel %vm88, %v175, 0.0
    %v180 = vrot.slane %v179, 4
    %v181 = vadd.f32 %v179, %v180
    %v182 = vrot.slane %v181, 2
    %v183 = vadd.f32 %v181, %v182
    %v184 = vrot.slane %v183, 1
    %v185 = vadd.f32 %v183, %v184
    %v186 = vsel %vm88, %v176, 0.0
    %v187 = vrot.slane %v186, 4
    %v188 = vadd.f32 %v186, %v187
    %v189 = vrot.slane %v188, 2
    %v190 = vadd.f32 %v188, %v189
    %v191 = vrot.slane %v190, 1
    %v192 = vadd.f32 %v190, %v191
    %193 = vmatprep.subr.mxu0 %v167
    %194 = vmatpush1.xpose.msra.mxu0 %v166
    %195 = vmatprep.subr.mxu0 0.0
    %196 = vmatpush1.xpose.msra.mxu0 0.0
    %197 = vmatprep.subr.mxu0 0.0
    %198 = vmatpush1.xpose.msra.mxu0 0.0
    %199 = vmatprep.subr.mxu0 0.0
    %200 = vmatpush1.xpose.msra.mxu0 0.0
    %201 = vmatprep.subr.mxu0 0.0
    %202 = vmatpush1.xpose.msra.mxu0 0.0
    %203 = vmatprep.subr.mxu0 0.0
    %204 = vmatpush1.xpose.msra.mxu0 0.0
    %205 = vmatprep.subr.mxu0 0.0
    %206 = vmatpush1.xpose.msra.mxu0 0.0
    %207 = vmatprep.subr.mxu0 0.0
    %208 = vmatpush1.xpose.msra.mxu0 0.0
    %209 = vmatprep.subr.mxu0 0.0
    %210 = vmatpush1.xpose.msra.mxu0 0.0
    %211 = vmatprep.subr.mxu0 0.0
    %212 = vmatpush1.xpose.msra.mxu0 0.0
    %213 = vmatprep.subr.mxu0 0.0
    %214 = vmatpush1.xpose.msra.mxu0 0.0
    %215 = vmatprep.subr.mxu0 0.0
    %216 = vmatpush1.xpose.msra.mxu0 0.0
    %217 = vmatprep.subr.mxu0 0.0
    %218 = vmatpush1.xpose.msra.mxu0 0.0
    %219 = vmatprep.subr.mxu0 0.0
    %220 = vmatpush1.xpose.msra.mxu0 0.0
    %221 = vmatprep.subr.mxu0 0.0
    %222 = vmatpush1.xpose.msra.mxu0 0.0
    %223 = vmatprep.subr.mxu0 0.0
    %224 = vmatpush1.xpose.msra.mxu0 0.0
    %225 = vmatprep.subr.mxu0 0.0
    %226 = vmatpush1.xpose.msra.mxu0 0.0
    %227 = vmatprep.subr.mxu0 0.0
    %228 = vmatpush1.xpose.msra.mxu0 0.0
    %229 = vmatprep.subr.mxu0 0.0
    %230 = vmatpush1.xpose.msra.mxu0 0.0
    %231 = vmatprep.subr.mxu0 0.0
    %232 = vmatpush1.xpose.msra.mxu0 0.0
    %233 = vmatprep.subr.mxu0 0.0
    %234 = vmatpush1.xpose.msra.mxu0 0.0
    %235 = vmatprep.subr.mxu0 0.0
    %236 = vmatpush1.xpose.msra.mxu0 0.0
    %237 = vmatprep.subr.mxu0 0.0
    %238 = vmatpush1.xpose.msra.mxu0 0.0
    %239 = vmatprep.subr.mxu0 0.0
    %240 = vmatpush1.xpose.msra.mxu0 0.0
    %241 = vmatprep.subr.mxu0 0.0
    %242 = vmatpush1.xpose.msra.mxu0 0.0
    %243 = vmatprep.subr.mxu0 0.0
    %244 = vmatpush1.xpose.msra.mxu0 0.0
    %245 = vmatprep.subr.mxu0 0.0
    %246 = vmatpush1.xpose.msra.mxu0 0.0
    %247 = vmatprep.subr.mxu0 0.0
    %248 = vmatpush1.xpose.msra.mxu0 0.0
    %249 = vmatprep.subr.mxu0 0.0
    %250 = vmatpush1.xpose.msra.mxu0 0.0
    %251 = vmatprep.subr.mxu0 0.0
    %252 = vmatpush1.xpose.msra.mxu0 0.0
    %253 = vmatprep.subr.mxu0 0.0
    %254 = vmatpush1.xpose.msra.mxu0 0.0
    %255 = vmatprep.subr.mxu0 0.0
    %256 = vmatpush1.xpose.msra.mxu0 0.0
    %257 = vmatprep.mubr.f32.mxu0 %v192
    %258 = vmatmul.mubr.f32.gmra.mrb[0].mxu0 %v185
    %v259 = vpop.f32.mrb[0].mxu0
    %v260 = vadd.f32 0.0, %v259
    %v261 = vpop.f32.mrb[0].mxu0
    %262 = vdwg.mxu0
    %vm263 = vcmask 64512
    %v265 = vsel %vm263, %v260, 0
    %267 = vmatprep.subr.mxu0 %v167
    %268 = vmatpush1.msra.mxu0 %v166
    %269 = vmatprep.subr.mxu0 0.0
    %270 = vmatpush1.msra.mxu0 0.0
    %271 = vmatprep.subr.mxu0 0.0
    %272 = vmatpush1.msra.mxu0 0.0
    %273 = vmatprep.subr.mxu0 0.0
    %274 = vmatpush1.msra.mxu0 0.0
    %275 = vmatprep.subr.mxu0 0.0
    %276 = vmatpush1.msra.mxu0 0.0
    %277 = vmatprep.subr.mxu0 0.0
    %278 = vmatpush1.msra.mxu0 0.0
    %279 = vmatprep.subr.mxu0 0.0
    %280 = vmatpush1.msra.mxu0 0.0
    %281 = vmatprep.subr.mxu0 0.0
    %282 = vmatpush1.msra.mxu0 0.0
    %283 = vmatprep.subr.mxu0 0.0
    %284 = vmatpush1.msra.mxu0 0.0
    %285 = vmatprep.subr.mxu0 0.0
    %286 = vmatpush1.msra.mxu0 0.0
    %287 = vmatprep.subr.mxu0 0.0
    %288 = vmatpush1.msra.mxu0 0.0
    %289 = vmatprep.subr.mxu0 0.0
    %290 = vmatpush1.msra.mxu0 0.0
    %291 = vmatprep.subr.mxu0 0.0
    %292 = vmatpush1.msra.mxu0 0.0
    %293 = vmatprep.subr.mxu0 0.0
    %294 = vmatpush1.msra.mxu0 0.0
    %295 = vmatprep.subr.mxu0 0.0
    %296 = vmatpush1.msra.mxu0 0.0
    %297 = vmatprep.subr.mxu0 0.0
    %298 = vmatpush1.msra.mxu0 0.0
    %299 = vmatprep.subr.mxu0 0.0
    %300 = vmatpush1.msra.mxu0 0.0
    %301 = vmatprep.subr.mxu0 0.0
    %302 = vmatpush1.msra.mxu0 0.0
    %303 = vmatprep.subr.mxu0 0.0
    %304 = vmatpush1.msra.mxu0 0.0
    %305 = vmatprep.subr.mxu0 0.0
    %306 = vmatpush1.msra.mxu0 0.0
    %307 = vmatprep.subr.mxu0 0.0
    %308 = vmatpush1.msra.mxu0 0.0
    %309 = vmatprep.subr.mxu0 0.0
    %310 = vmatpush1.msra.mxu0 0.0
    %311 = vmatprep.subr.mxu0 0.0
    %312 = vmatpush1.msra.mxu0 0.0
    %313 = vmatprep.subr.mxu0 0.0
    %314 = vmatpush1.msra.mxu0 0.0
    %315 = vmatprep.subr.mxu0 0.0
    %316 = vmatpush1.msra.mxu0 0.0
    %317 = vmatprep.subr.mxu0 0.0
    %318 = vmatpush1.msra.mxu0 0.0
    %319 = vmatprep.subr.mxu0 0.0
    %320 = vmatpush1.msra.mxu0 0.0
    %321 = vmatprep.subr.mxu0 0.0
    %322 = vmatpush1.msra.mxu0 0.0
    %323 = vmatprep.subr.mxu0 0.0
    %324 = vmatpush1.msra.mxu0 0.0
    %325 = vmatprep.subr.mxu0 0.0
    %326 = vmatpush1.msra.mxu0 0.0
    %327 = vmatprep.subr.mxu0 0.0
    %328 = vmatpush1.msra.mxu0 0.0
    %329 = vmatprep.subr.mxu0 0.0
    %330 = vmatpush1.msra.mxu0 0.0
    %331 = vmatprep.mubr.f32.mxu0 0.0
    %332 = vmatmul.mubr.f32.gmra.mrb[0].mxu0 %v265
    %v333 = vpop.f32.mrb[0].mxu0
    %v334 = vadd.f32 0.0, %v333
    %v335 = vpop.f32.mrb[0].mxu0
    %v336 = vadd.f32 0.0, %v335
    %337 = vdwg.mxu0
    %v338 = vstv %s48
    %v339 = vmul.f32 %v334, %v338
    %v340 = vmul.f32 %v336, %v338
    %v341 = vlaneseq
    %v342 = vshrl.u32 %v341, 7
    %v343 = vsub.s32 0, %v342
    %v344 = vrot.slane %v339, %v343
    %v345 = vlaneseq
    %v346 = vshrl.u32 %v345, 7
    %v347 = vsub.s32 0, %v346
    %v348 = vrot.slane %v340, %v347
    %v351 = vcombine.low %v344, %v348
    %v353 = vunpack.c.l.s4 1983009808
    %v354 = vunpack.c.0.s8 %v353
    %v355 = vlaneseq
    %v356 = vshrl.u32 %v355, 7
    %v357 = vsub.s32 %v354, %v356
    %v358 = vrot.slane %v351, %v357
    %v360 = vsub.f32 %v50, %v358
    %v361 = vmul.f32 %v360, %v360
    %v364 = vunpack.c.l.s4 1983009808
    %v365 = vunpack.c.0.s8 %v364
    %v366 = vlaneseq
    %v367 = vshrl.u32 %v366, 7
    %v368 = vsub.s32 %v365, %v367
    %v369 = vrot.slane %v361, %v368
    %v370 = vcombine.high %v369, %v369
    %v373 = vsel %vm88, %v369, 0.0
    %v374 = vrot.slane %v373, 4
    %v375 = vadd.f32 %v373, %v374
    %v376 = vrot.slane %v375, 2
    %v377 = vadd.f32 %v375, %v376
    %v378 = vrot.slane %v377, 1
    %v379 = vadd.f32 %v377, %v378
    %v380 = vsel %vm88, %v370, 0.0
    %v381 = vrot.slane %v380, 4
    %v382 = vadd.f32 %v380, %v381
    %v383 = vrot.slane %v382, 2
    %v384 = vadd.f32 %v382, %v383
    %v385 = vrot.slane %v384, 1
    %v386 = vadd.f32 %v384, %v385
    %387 = vmatprep.subr.mxu0 %v167
    %388 = vmatpush1.xpose.msra.mxu0 %v166
    %389 = vmatprep.subr.mxu0 0.0
    %390 = vmatpush1.xpose.msra.mxu0 0.0
    %391 = vmatprep.subr.mxu0 0.0
    %392 = vmatpush1.xpose.msra.mxu0 0.0
    %393 = vmatprep.subr.mxu0 0.0
    %394 = vmatpush1.xpose.msra.mxu0 0.0
    %395 = vmatprep.subr.mxu0 0.0
    %396 = vmatpush1.xpose.msra.mxu0 0.0
    %397 = vmatprep.subr.mxu0 0.0
    %398 = vmatpush1.xpose.msra.mxu0 0.0
    %399 = vmatprep.subr.mxu0 0.0
    %400 = vmatpush1.xpose.msra.mxu0 0.0
    %401 = vmatprep.subr.mxu0 0.0
    %402 = vmatpush1.xpose.msra.mxu0 0.0
    %403 = vmatprep.subr.mxu0 0.0
    %404 = vmatpush1.xpose.msra.mxu0 0.0
    %405 = vmatprep.subr.mxu0 0.0
    %406 = vmatpush1.xpose.msra.mxu0 0.0
    %407 = vmatprep.subr.mxu0 0.0
    %408 = vmatpush1.xpose.msra.mxu0 0.0
    %409 = vmatprep.subr.mxu0 0.0
    %410 = vmatpush1.xpose.msra.mxu0 0.0
    %411 = vmatprep.subr.mxu0 0.0
    %412 = vmatpush1.xpose.msra.mxu0 0.0
    %413 = vmatprep.subr.mxu0 0.0
    %414 = vmatpush1.xpose.msra.mxu0 0.0
    %415 = vmatprep.subr.mxu0 0.0
    %416 = vmatpush1.xpose.msra.mxu0 0.0
    %417 = vmatprep.subr.mxu0 0.0
    %418 = vmatpush1.xpose.msra.mxu0 0.0
    %419 = vmatprep.subr.mxu0 0.0
    %420 = vmatpush1.xpose.msra.mxu0 0.0
    %421 = vmatprep.subr.mxu0 0.0
    %422 = vmatpush1.xpose.msra.mxu0 0.0
    %423 = vmatprep.subr.mxu0 0.0
    %424 = vmatpush1.xpose.msra.mxu0 0.0
    %425 = vmatprep.subr.mxu0 0.0
    %426 = vmatpush1.xpose.msra.mxu0 0.0
    %427 = vmatprep.subr.mxu0 0.0
    %428 = vmatpush1.xpose.msra.mxu0 0.0
    %429 = vmatprep.subr.mxu0 0.0
    %430 = vmatpush1.xpose.msra.mxu0 0.0
    %431 = vmatprep.subr.mxu0 0.0
    %432 = vmatpush1.xpose.msra.mxu0 0.0
    %433 = vmatprep.subr.mxu0 0.0
    %434 = vmatpush1.xpose.msra.mxu0 0.0
    %435 = vmatprep.subr.mxu0 0.0
    %436 = vmatpush1.xpose.msra.mxu0 0.0
    %437 = vmatprep.subr.mxu0 0.0
    %438 = vmatpush1.xpose.msra.mxu0 0.0
    %439 = vmatprep.subr.mxu0 0.0
    %440 = vmatpush1.xpose.msra.mxu0 0.0
    %441 = vmatprep.subr.mxu0 0.0
    %442 = vmatpush1.xpose.msra.mxu0 0.0
    %443 = vmatprep.subr.mxu0 0.0
    %444 = vmatpush1.xpose.msra.mxu0 0.0
    %445 = vmatprep.subr.mxu0 0.0
    %446 = vmatpush1.xpose.msra.mxu0 0.0
    %447 = vmatprep.subr.mxu0 0.0
    %448 = vmatpush1.xpose.msra.mxu0 0.0
    %449 = vmatprep.subr.mxu0 0.0
    %450 = vmatpush1.xpose.msra.mxu0 0.0
    %451 = vmatprep.mubr.f32.mxu0 %v386
    %452 = vmatmul.mubr.f32.gmra.mrb[0].mxu0 %v379
    %v453 = vpop.f32.mrb[0].mxu0
    %v454 = vadd.f32 0.0, %v453
    %v455 = vpop.f32.mrb[0].mxu0
    %456 = vdwg.mxu0
    %v458 = vsel %vm263, %v454, 0
    %460 = vmatprep.subr.mxu0 %v167
    %461 = vmatpush1.msra.mxu0 %v166
    %462 = vmatprep.subr.mxu0 0.0
    %463 = vmatpush1.msra.mxu0 0.0
    %464 = vmatprep.subr.mxu0 0.0
    %465 = vmatpush1.msra.mxu0 0.0
    %466 = vmatprep.subr.mxu0 0.0
    %467 = vmatpush1.msra.mxu0 0.0
    %468 = vmatprep.subr.mxu0 0.0
    %469 = vmatpush1.msra.mxu0 0.0
    %470 = vmatprep.subr.mxu0 0.0
    %471 = vmatpush1.msra.mxu0 0.0
    %472 = vmatprep.subr.mxu0 0.0
    %473 = vmatpush1.msra.mxu0 0.0
    %474 = vmatprep.subr.mxu0 0.0
    %475 = vmatpush1.msra.mxu0 0.0
    %476 = vmatprep.subr.mxu0 0.0
    %477 = vmatpush1.msra.mxu0 0.0
    %478 = vmatprep.subr.mxu0 0.0
    %479 = vmatpush1.msra.mxu0 0.0
    %480 = vmatprep.subr.mxu0 0.0
    %481 = vmatpush1.msra.mxu0 0.0
    %482 = vmatprep.subr.mxu0 0.0
    %483 = vmatpush1.msra.mxu0 0.0
    %484 = vmatprep.subr.mxu0 0.0
    %485 = vmatpush1.msra.mxu0 0.0
    %486 = vmatprep.subr.mxu0 0.0
    %487 = vmatpush1.msra.mxu0 0.0
    %488 = vmatprep.subr.mxu0 0.0
    %489 = vmatpush1.msra.mxu0 0.0
    %490 = vmatprep.subr.mxu0 0.0
    %491 = vmatpush1.msra.mxu0 0.0
    %492 = vmatprep.subr.mxu0 0.0
    %493 = vmatpush1.msra.mxu0 0.0
    %494 = vmatprep.subr.mxu0 0.0
    %495 = vmatpush1.msra.mxu0 0.0
    %496 = vmatprep.subr.mxu0 0.0
    %497 = vmatpush1.msra.mxu0 0.0
    %498 = vmatprep.subr.mxu0 0.0
    %499 = vmatpush1.msra.mxu0 0.0
    %500 = vmatprep.subr.mxu0 0.0
    %501 = vmatpush1.msra.mxu0 0.0
    %502 = vmatprep.subr.mxu0 0.0
    %503 = vmatpush1.msra.mxu0 0.0
    %504 = vmatprep.subr.mxu0 0.0
    %505 = vmatpush1.msra.mxu0 0.0
    %506 = vmatprep.subr.mxu0 0.0
    %507 = vmatpush1.msra.mxu0 0.0
    %508 = vmatprep.subr.mxu0 0.0
    %509 = vmatpush1.msra.mxu0 0.0
    %510 = vmatprep.subr.mxu0 0.0
    %511 = vmatpush1.msra.mxu0 0.0
    %512 = vmatprep.subr.mxu0 0.0
    %513 = vmatpush1.msra.mxu0 0.0
    %514 = vmatprep.subr.mxu0 0.0
    %515 = vmatpush1.msra.mxu0 0.0
    %516 = vmatprep.subr.mxu0 0.0
    %517 = vmatpush1.msra.mxu0 0.0
    %518 = vmatprep.subr.mxu0 0.0
    %519 = vmatpush1.msra.mxu0 0.0
    %520 = vmatprep.subr.mxu0 0.0
    %521 = vmatpush1.msra.mxu0 0.0
    %522 = vmatprep.subr.mxu0 0.0
    %523 = vmatpush1.msra.mxu0 0.0
    %524 = vmatprep.mubr.f32.mxu0 0.0
    %525 = vmatmul.mubr.f32.gmra.mrb[0].mxu0 %v458
    %v526 = vpop.f32.mrb[0].mxu0
    %v527 = vadd.f32 0.0, %v526
    %v528 = vpop.f32.mrb[0].mxu0
    %v529 = vadd.f32 0.0, %v528
    %530 = vdwg.mxu0
    %v531 = vmul.f32 %v527, %v338
    %v532 = vmul.f32 %v529, %v338
    %v533 = vadd.f32 %v531, 1e-05
    %v534 = vadd.f32 %v532, 1e-05
    %v535 = vrsqrt.pop %v533
    %v536 = vrsqrt.pop %v534
    %v538 = vlaneseq
    %v539 = vshrl.u32 %v538, 7
    %v540 = vsub.s32 0, %v539
    %v541 = vrot.slane %v54, %v540
    %v542 = vlaneseq
    %v543 = vshrl.u32 %v542, 7
    %v544 = vsub.s32 1, %v543
    %v545 = vrot.slane %v54, %v544
    %v548 = vmul.f32 %v535, %v541
    %v549 = vmul.f32 %v536, %v545
    %v550 = vlaneseq
    %v551 = vshrl.u32 %v550, 7
    %v552 = vsub.s32 0, %v551
    %v553 = vrot.slane %v548, %v552
    %v554 = vlaneseq
    %v555 = vshrl.u32 %v554, 7
    %v556 = vsub.s32 0, %v555
    %v557 = vrot.slane %v549, %v556
    %v560 = vcombine.low %v553, %v557
    %v562 = vunpack.c.l.s4 1983009808
    %v563 = vunpack.c.0.s8 %v562
    %v564 = vlaneseq
    %v565 = vshrl.u32 %v564, 7
    %v566 = vsub.s32 %v563, %v565
    %v567 = vrot.slane %v560, %v566
    %v569 = vmul.f32 %v360, %v567
    %v571 = vlaneseq
    %v572 = vshrl.u32 %v571, 7
    %v573 = vsub.s32 0, %v572
    %v574 = vrot.slane %v56, %v573
    %v575 = vlaneseq
    %v576 = vshrl.u32 %v575, 7
    %v577 = vsub.s32 1, %v576
    %v578 = vrot.slane %v56, %v577
    %v579 = vcombine.low %v574, %v578
    %v581 = vunpack.c.l.s4 1983009808
    %v582 = vunpack.c.0.s8 %v581
    %v583 = vlaneseq
    %v584 = vshrl.u32 %v583, 7
    %v585 = vsub.s32 %v582, %v584
    %v586 = vrot.slane %v579, %v585
    %v588 = vadd.f32 %v569, %v586
    %v589 = vsub.f32 %v51, %v358
    %v590 = vmul.f32 %v589, %v567
    %v591 = vadd.f32 %v590, %v586
    %v594 = vunpack.c.l.s4 1983009808
    %v595 = vunpack.c.0.s8 %v594
    %v596 = vlaneseq
    %v597 = vshrl.u32 %v596, 7
    %v598 = vsub.s32 %v595, %v597
    %v599 = vrot.slane %v588, %v598
    %v600 = vcombine.high %v599, %v599
    %v603 = vadd.f32 %v162, %v599
    %v604 = vadd.f32 %v164, %v600
    %v607 = vcombine.low %v603, %v604
    %v609 = vunpack.c.l.s4 1983009808
    %v610 = vunpack.c.0.s8 %v609
    %v611 = vlaneseq
    %v612 = vshrl.u32 %v611, 7
    %v613 = vsub.s32 %v610, %v612
    %v614 = vrot.slane %v607, %v613
    %v616 = vadd.f32 %v591, %v614
    %v619 = vcombine.low %v162, %v164
    %v621 = vunpack.c.l.s4 1983009808
    %v622 = vunpack.c.0.s8 %v621
    %v623 = vlaneseq
    %v624 = vshrl.u32 %v623, 7
    %v625 = vsub.s32 %v622, %v624
    %v626 = vrot.slane %v619, %v625
    %v628 = vsub.f32 %v591, %v626
    %v629 = vadd.f32 %v588, %v628
    %v630 = vadd.f32 %v629, %v591
    %631 = vst [vmem:[%s8] sm:$0xf] %v616
    %632 = vst [vmem:[%s9] sm:$0xf] %v630
    %v635 = vunpack.c.l.s4 1983009808
    %v636 = vunpack.c.0.s8 %v635
    %v637 = vlaneseq
    %v638 = vshrl.u32 %v637, 7
    %v639 = vsub.s32 %v636, %v638
    %v640 = vrot.slane %v616, %v639
    %v641 = vcombine.high %v640, %v640
    %v644 = vpack.c.bf16 %v640, %v640
    %v645 = vpack.c.bf16 %v641, %v641
    %v646 = vld [vmem:[#allocation3] sm:$0xff]
    %v647 = vld [vmem:[#allocation3 + $0x8] sm:$0xff]
    %v648 = vld [vmem:[#allocation3 + $0x10] sm:$0xf]
    %v649 = vld [vmem:[#allocation3 + $0x14] sm:$0xff]
    %v650 = vld [vmem:[#allocation3 + $0x1c] sm:$0xff]
    %v651 = vld [vmem:[#allocation3 + $0x24] sm:$0xf]
    %v652 = vld [vmem:[#allocation3 + $0x28] sm:$0xff]
    %v653 = vld [vmem:[#allocation3 + $0x30] sm:$0xff]
    %v654 = vld [vmem:[#allocation3 + $0x38] sm:$0xf]
    %v655 = vld [vmem:[#allocation3 + $0x3c] sm:$0xff]
    %v656 = vld [vmem:[#allocation3 + $0x44] sm:$0xff]
    %v657 = vld [vmem:[#allocation3 + $0x4c] sm:$0xf]
    %v658 = vld [vmem:[#allocation3 + $0x50] sm:$0xff]
    %v659 = vld [vmem:[#allocation3 + $0x58] sm:$0xff]
    %v660 = vld [vmem:[#allocation3 + $0x60] sm:$0xf]
    %v661 = vld [vmem:[#allocation3 + $0x64] sm:$0xff]
    %v662 = vld [vmem:[#allocation3 + $0x6c] sm:$0xff]
    %v663 = vld [vmem:[#allocation3 + $0x74] sm:$0xf]
    %v664 = vld [vmem:[#allocation3 + $0x78] sm:$0xff]
    %v665 = vld [vmem:[#allocation3 + $0x80] sm:$0xff]
    %v666 = vld [vmem:[#allocation3 + $0x88] sm:$0xf]
    %v667 = vld [vmem:[#allocation3 + $0x8c] sm:$0xff]
    %v668 = vld [vmem:[#allocation3 + $0x94] sm:$0xff]
    %v669 = vld [vmem:[#allocation3 + $0x9c] sm:$0xf]
    %v670 = vld [vmem:[#allocation3 + $0xa0] sm:$0xff]
    %v671 = vld [vmem:[#allocation3 + $0xa8] sm:$0xff]
    %v672 = vld [vmem:[#allocation3 + $0xb0] sm:$0xf]
    %v673 = vld [vmem:[#allocation3 + $0xb4] sm:$0xff]
    %v674 = vld [vmem:[#allocation3 + $0xbc] sm:$0xff]
    %v675 = vld [vmem:[#allocation3 + $0xc4] sm:$0xf]
    %v676 = vld [vmem:[#allocation3 + $0xc8] sm:$0xff]
    %v677 = vld [vmem:[#allocation3 + $0xd0] sm:$0xff]
    %v678 = vld [vmem:[#allocation3 + $0xd8] sm:$0xf]
    %v679 = vld [vmem:[#allocation3 + $0xdc] sm:$0xff]
    %v680 = vld [vmem:[#allocation3 + $0xe4] sm:$0xff]
    %v681 = vld [vmem:[#allocation3 + $0xec] sm:$0xf]
    %v682 = vld [vmem:[#allocation3 + $0xf0] sm:$0xff]
    %v683 = vld [vmem:[#allocation3 + $0xf8] sm:$0xff]
    %v684 = vld [vmem:[#allocation3 + $0x100] sm:$0xf]
    %v685 = vld [vmem:[#allocation3 + $0x104] sm:$0xff]
    %v686 = vld [vmem:[#allocation3 + $0x10c] sm:$0xff]
    %v687 = vld [vmem:[#allocation3 + $0x114] sm:$0xf]
    %v688 = vld [vmem:[#allocation3 + $0x118] sm:$0xff]
    %v689 = vld [vmem:[#allocation3 + $0x120] sm:$0xff]
    %v690 = vld [vmem:[#allocation3 + $0x128] sm:$0xf]
    %v691 = vld [vmem:[#allocation3 + $0x12c] sm:$0xff]
    %v692 = vld [vmem:[#allocation3 + $0x134] sm:$0xff]
    %v693 = vld [vmem:[#allocation3 + $0x13c] sm:$0xf]
    %v694 = vld [vmem:[#allocation3 + $0x140] sm:$0xff]
    %v695 = vld [vmem:[#allocation3 + $0x148] sm:$0xff]
    %v696 = vld [vmem:[#allocation3 + $0x150] sm:$0xf]
    %v697 = vld [vmem:[#allocation3 + $0x154] sm:$0xff]
    %v698 = vld [vmem:[#allocation3 + $0x15c] sm:$0xff]
    %v699 = vld [vmem:[#allocation3 + $0x164] sm:$0xf]
    %v700 = vld [vmem:[#allocation3 + $0x168] sm:$0xff]
    %v701 = vld [vmem:[#allocation3 + $0x170] sm:$0xff]
    %v702 = vld [vmem:[#allocation3 + $0x178] sm:$0xf]
    %v703 = vld [vmem:[#allocation3 + $0x17c] sm:$0xff]
    %v704 = vld [vmem:[#allocation3 + $0x184] sm:$0xff]
    %v705 = vld [vmem:[#allocation3 + $0x18c] sm:$0xf]
    %v706 = vld [vmem:[#allocation3 + $0x190] sm:$0xff]
    %v707 = vld [vmem:[#allocation3 + $0x198] sm:$0xff]
    %v708 = vld [vmem:[#allocation3 + $0x1a0] sm:$0xf]
    %v709 = vld [vmem:[#allocation3 + $0x1a4] sm:$0xff]
    %v710 = vld [vmem:[#allocation3 + $0x1ac] sm:$0xff]
    %v711 = vld [vmem:[#allocation3 + $0x1b4] sm:$0xf]
    %v712 = vld [vmem:[#allocation3 + $0x1b8] sm:$0xff]
    %v713 = vld [vmem:[#allocation3 + $0x1c0] sm:$0xff]
    %v714 = vld [vmem:[#allocation3 + $0x1c8] sm:$0xf]
    %v715 = vld [vmem:[#allocation3 + $0x1cc] sm:$0xff]
    %v716 = vld [vmem:[#allocation3 + $0x1d4] sm:$0xff]
    %v717 = vld [vmem:[#allocation3 + $0x1dc] sm:$0xf]
    %v718 = vld [vmem:[#allocation3 + $0x1e0] sm:$0xff]
    %v719 = vld [vmem:[#allocation3 + $0x1e8] sm:$0xff]
    %v720 = vld [vmem:[#allocation3 + $0x1f0] sm:$0xf]
    %v721 = vld [vmem:[#allocation3 + $0x1f4] sm:$0xff]
    %v722 = vld [vmem:[#allocation3 + $0x1fc] sm:$0xff]
    %v723 = vld [vmem:[#allocation3 + $0x204] sm:$0xf]
    %v724 = vld [vmem:[#allocation3 + $0x208] sm:$0xff]
    %v725 = vld [vmem:[#allocation3 + $0x210] sm:$0xff]
    %v726 = vld [vmem:[#allocation3 + $0x218] sm:$0xf]
    %v727 = vld [vmem:[#allocation3 + $0x21c] sm:$0xff]
    %v728 = vld [vmem:[#allocation3 + $0x224] sm:$0xff]
    %v729 = vld [vmem:[#allocation3 + $0x22c] sm:$0xf]
    %v730 = vld [vmem:[#allocation3 + $0x230] sm:$0xff]
    %v731 = vld [vmem:[#allocation3 + $0x238] sm:$0xff]
    %v732 = vld [vmem:[#allocation3 + $0x240] sm:$0xf]
    %v733 = vld [vmem:[#allocation3 + $0x244] sm:$0xff]
    %v734 = vld [vmem:[#allocation3 + $0x24c] sm:$0xff]
    %v735 = vld [vmem:[#allocation3 + $0x254] sm:$0xf]
    %v736 = vld [vmem:[#allocation3 + $0x258] sm:$0xff]
    %v737 = vld [vmem:[#allocation3 + $0x260] sm:$0xff]
    %v738 = vld [vmem:[#allocation3 + $0x268] sm:$0xf]
    %v739 = vld [vmem:[#allocation3 + $0x26c] sm:$0xff]
    %v740 = vld [vmem:[#allocation3 + $0x274] sm:$0xff]
    %v741 = vld [vmem:[#allocation3 + $0x27c] sm:$0xf]
    %v743 = vlaneseq
    %v744 = vshrl.u32 %v743, 7
    %v745 = vsub.s32 0, %v744
    %v746 = vrot.slane %v58, %v745
    %v747 = vlaneseq
    %v748 = vshrl.u32 %v747, 7
    %v749 = vsub.s32 1, %v748
    %v750 = vrot.slane %v58, %v749
    %v751 = vlaneseq
    %v752 = vshrl.u32 %v751, 7
    %v753 = vsub.s32 2, %v752
    %v754 = vrot.slane %v58, %v753
    %v755 = vlaneseq
    %v756 = vshrl.u32 %v755, 7
    %v757 = vsub.s32 3, %v756
    %v758 = vrot.slane %v58, %v757
    %v759 = vlaneseq
    %v760 = vshrl.u32 %v759, 7
    %v761 = vsub.s32 4, %v760
    %v762 = vrot.slane %v58, %v761
    %v864 = vunpack.c.l.b16 %v646
    %v865 = vunpack.c.h.b16 %v646
    %v866 = vunpack.c.l.b16 %v647
    %v867 = vunpack.c.h.b16 %v647
    %v868 = vunpack.c.l.b16 %v648
    %v869 = vunpack.c.l.b16 %v649
    %v870 = vunpack.c.h.b16 %v649
    %v871 = vunpack.c.l.b16 %v650
    %v872 = vunpack.c.h.b16 %v650
    %v873 = vunpack.c.l.b16 %v651
    %v874 = vunpack.c.l.b16 %v652
    %v875 = vunpack.c.h.b16 %v652
    %v876 = vunpack.c.l.b16 %v653
    %v877 = vunpack.c.h.b16 %v653
    %v878 = vunpack.c.l.b16 %v654
    %v879 = vunpack.c.l.b16 %v655
    %v880 = vunpack.c.h.b16 %v655
    %v881 = vunpack.c.l.b16 %v656
    %v882 = vunpack.c.h.b16 %v656
    %v883 = vunpack.c.l.b16 %v657
    %v884 = vunpack.c.l.b16 %v658
    %v885 = vunpack.c.h.b16 %v658
    %v886 = vunpack.c.l.b16 %v659
    %v887 = vunpack.c.h.b16 %v659
    %v888 = vunpack.c.l.b16 %v660
    %v889 = vunpack.c.l.b16 %v661
    %v890 = vunpack.c.h.b16 %v661
    %v891 = vunpack.c.l.b16 %v662
    %v892 = vunpack.c.h.b16 %v662
    %v893 = vunpack.c.l.b16 %v663
    %v894 = vunpack.c.l.b16 %v664
    %v895 = vunpack.c.h.b16 %v664
    %v896 = vunpack.c.l.b16 %v665
    %v897 = vunpack.c.h.b16 %v665
    %v898 = vunpack.c.l.b16 %v666
    %v899 = vunpack.c.l.b16 %v667
    %v900 = vunpack.c.h.b16 %v667
    %v901 = vunpack.c.l.b16 %v668
    %v902 = vunpack.c.h.b16 %v668
    %v903 = vunpack.c.l.b16 %v669
    %v904 = vunpack.c.l.b16 %v670
    %v905 = vunpack.c.h.b16 %v670
    %v906 = vunpack.c.l.b16 %v671
    %v907 = vunpack.c.h.b16 %v671
    %v908 = vunpack.c.l.b16 %v672
    %v909 = vunpack.c.l.b16 %v673
    %v910 = vunpack.c.h.b16 %v673
    %v911 = vunpack.c.l.b16 %v674
    %v912 = vunpack.c.h.b16 %v674
    %v913 = vunpack.c.l.b16 %v675
    %v914 = vunpack.c.l.b16 %v676
    %v915 = vunpack.c.h.b16 %v676
    %v916 = vunpack.c.l.b16 %v677
    %v917 = vunpack.c.h.b16 %v677
    %v918 = vunpack.c.l.b16 %v678
    %v919 = vunpack.c.l.b16 %v679
    %v920 = vunpack.c.h.b16 %v679
    %v921 = vunpack.c.l.b16 %v680
    %v922 = vunpack.c.h.b16 %v680
    %v923 = vunpack.c.l.b16 %v681
    %v924 = vunpack.c.l.b16 %v682
    %v925 = vunpack.c.h.b16 %v682
    %v926 = vunpack.c.l.b16 %v683
    %v927 = vunpack.c.h.b16 %v683
    %v928 = vunpack.c.l.b16 %v684
    %v929 = vunpack.c.l.b16 %v685
    %v930 = vunpack.c.h.b16 %v685
    %v931 = vunpack.c.l.b16 %v686
    %v932 = vunpack.c.h.b16 %v686
    %v933 = vunpack.c.l.b16 %v687
    %v934 = vunpack.c.l.b16 %v688
    %v935 = vunpack.c.h.b16 %v688
    %v936 = vunpack.c.l.b16 %v689
    %v937 = vunpack.c.h.b16 %v689
    %v938 = vunpack.c.l.b16 %v690
    %v939 = vunpack.c.l.b16 %v691
    %v940 = vunpack.c.h.b16 %v691
    %v941 = vunpack.c.l.b16 %v692
    %v942 = vunpack.c.h.b16 %v692
    %v943 = vunpack.c.l.b16 %v693
    %v944 = vunpack.c.l.b16 %v694
    %v945 = vunpack.c.h.b16 %v694
    %v946 = vunpack.c.l.b16 %v695
    %v947 = vunpack.c.h.b16 %v695
    %v948 = vunpack.c.l.b16 %v696
    %v949 = vunpack.c.l.b16 %v697
    %v950 = vunpack.c.h.b16 %v697
    %v951 = vunpack.c.l.b16 %v698
    %v952 = vunpack.c.h.b16 %v698
    %v953 = vunpack.c.l.b16 %v699
    %v954 = vunpack.c.l.b16 %v700
    %v955 = vunpack.c.h.b16 %v700
    %v956 = vunpack.c.l.b16 %v701
    %v957 = vunpack.c.h.b16 %v701
    %v958 = vunpack.c.l.b16 %v702
    %v959 = vunpack.c.l.b16 %v703
    %v960 = vunpack.c.h.b16 %v703
    %v961 = vunpack.c.l.b16 %v704
    %v962 = vunpack.c.h.b16 %v704
    %v963 = vunpack.c.l.b16 %v705
    %v964 = vunpack.c.l.b16 %v706
    %v965 = vunpack.c.h.b16 %v706
    %v966 = vunpack.c.l.b16 %v707
    %v967 = vunpack.c.h.b16 %v707
    %v968 = vunpack.c.l.b16 %v708
    %v969 = vunpack.c.l.b16 %v709
    %v970 = vunpack.c.h.b16 %v709
    %v971 = vunpack.c.l.b16 %v710
    %v972 = vunpack.c.h.b16 %v710
    %v973 = vunpack.c.l.b16 %v711
    %v974 = vunpack.c.l.b16 %v712
    %v975 = vunpack.c.h.b16 %v712
    %v976 = vunpack.c.l.b16 %v713
    %v977 = vunpack.c.h.b16 %v713
    %v978 = vunpack.c.l.b16 %v714
    %v979 = vunpack.c.l.b16 %v715
    %v980 = vunpack.c.h.b16 %v715
    %v981 = vunpack.c.l.b16 %v716
    %v982 = vunpack.c.h.b16 %v716
    %v983 = vunpack.c.l.b16 %v717
    %v984 = vunpack.c.l.b16 %v718
    %v985 = vunpack.c.h.b16 %v718
    %v986 = vunpack.c.l.b16 %v719
    %v987 = vunpack.c.h.b16 %v719
    %v988 = vunpack.c.l.b16 %v720
    %v989 = vunpack.c.l.b16 %v721
    %v990 = vunpack.c.h.b16 %v721
    %v991 = vunpack.c.l.b16 %v722
    %v992 = vunpack.c.h.b16 %v722
    %v993 = vunpack.c.l.b16 %v723
    %v994 = vunpack.c.l.b16 %v724
    %v995 = vunpack.c.h.b16 %v724
    %v996 = vunpack.c.l.b16 %v725
    %v997 = vunpack.c.h.b16 %v725
    %v998 = vunpack.c.l.b16 %v726
    %v999 = vunpack.c.l.b16 %v727
    %v1000 = vunpack.c.h.b16 %v727
    %v1001 = vunpack.c.l.b16 %v728
    %v1002 = vunpack.c.h.b16 %v728
    %v1003 = vunpack.c.l.b16 %v729
    %v1004 = vunpack.c.l.b16 %v730
    %v1005 = vunpack.c.h.b16 %v730
    %v1006 = vunpack.c.l.b16 %v731
    %v1007 = vunpack.c.h.b16 %v731
    %v1008 = vunpack.c.l.b16 %v732
    %v1009 = vunpack.c.l.b16 %v733
    %v1010 = vunpack.c.h.b16 %v733
    %v1011 = vunpack.c.l.b16 %v734
    %v1012 = vunpack.c.h.b16 %v734
    %v1013 = vunpack.c.l.b16 %v735
    %v1014 = vunpack.c.l.b16 %v736
    %v1015 = vunpack.c.h.b16 %v736
    %v1016 = vunpack.c.l.b16 %v737
    %v1017 = vunpack.c.h.b16 %v737
    %v1018 = vunpack.c.l.b16 %v738
    %v1019 = vunpack.c.l.b16 %v739
    %v1020 = vunpack.c.h.b16 %v739
    %v1021 = vunpack.c.l.b16 %v740
    %v1022 = vunpack.c.h.b16 %v740
    %v1023 = vunpack.c.l.b16 %v741
    %v1024 = vpack.c.b16 %v869, %v864
    %v1025 = vpack.c.b16 %v870, %v865
    %v1026 = vpack.c.b16 %v871, %v866
    %v1027 = vpack.c.b16 %v872, %v867
    %v1028 = vpack.c.b16 %v873, %v868
    %v1029 = vpack.c.b16 %v879, %v874
    %v1030 = vpack.c.b16 %v880, %v875
    %v1031 = vpack.c.b16 %v881, %v876
    %v1032 = vpack.c.b16 %v882, %v877
    %v1033 = vpack.c.b16 %v883, %v878
    %v1034 = vpack.c.b16 %v889, %v884
    %v1035 = vpack.c.b16 %v890, %v885
    %v1036 = vpack.c.b16 %v891, %v886
    %v1037 = vpack.c.b16 %v892, %v887
    %v1038 = vpack.c.b16 %v893, %v888
    %v1039 = vpack.c.b16 %v899, %v894
    %v1040 = vpack.c.b16 %v900, %v895
    %v1041 = vpack.c.b16 %v901, %v896
    %v1042 = vpack.c.b16 %v902, %v897
    %v1043 = vpack.c.b16 %v903, %v898
    %v1044 = vpack.c.b16 %v909, %v904
    %v1045 = vpack.c.b16 %v910, %v905
    %v1046 = vpack.c.b16 %v911, %v906
    %v1047 = vpack.c.b16 %v912, %v907
    %v1048 = vpack.c.b16 %v913, %v908
    %v1049 = vpack.c.b16 %v919, %v914
    %v1050 = vpack.c.b16 %v920, %v915
    %v1051 = vpack.c.b16 %v921, %v916
    %v1052 = vpack.c.b16 %v922, %v917
    %v1053 = vpack.c.b16 %v923, %v918
    %v1054 = vpack.c.b16 %v929, %v924
    %v1055 = vpack.c.b16 %v930, %v925
    %v1056 = vpack.c.b16 %v931, %v926
    %v1057 = vpack.c.b16 %v932, %v927
    %v1058 = vpack.c.b16 %v933, %v928
    %v1059 = vpack.c.b16 %v939, %v934
    %v1060 = vpack.c.b16 %v940, %v935
    %v1061 = vpack.c.b16 %v941, %v936
    %v1062 = vpack.c.b16 %v942, %v937
    %v1063 = vpack.c.b16 %v943, %v938
    %v1064 = vpack.c.b16 %v949, %v944
    %v1065 = vpack.c.b16 %v950, %v945
    %v1066 = vpack.c.b16 %v951, %v946
    %v1067 = vpack.c.b16 %v952, %v947
    %v1068 = vpack.c.b16 %v953, %v948
    %v1069 = vpack.c.b16 %v959, %v954
    %v1070 = vpack.c.b16 %v960, %v955
    %v1071 = vpack.c.b16 %v961, %v956
    %v1072 = vpack.c.b16 %v962, %v957
    %v1073 = vpack.c.b16 %v963, %v958
    %v1074 = vpack.c.b16 %v969, %v964
    %v1075 = vpack.c.b16 %v970, %v965
    %v1076 = vpack.c.b16 %v971, %v966
    %v1077 = vpack.c.b16 %v972, %v967
    %v1078 = vpack.c.b16 %v973, %v968
    %v1079 = vpack.c.b16 %v979, %v974
    %v1080 = vpack.c.b16 %v980, %v975
    %v1081 = vpack.c.b16 %v981, %v976
    %v1082 = vpack.c.b16 %v982, %v977
    %v1083 = vpack.c.b16 %v983, %v978
    %v1084 = vpack.c.b16 %v989, %v984
    %v1085 = vpack.c.b16 %v990, %v985
    %v1086 = vpack.c.b16 %v991, %v986
    %v1087 = vpack.c.b16 %v992, %v987
    %v1088 = vpack.c.b16 %v993, %v988
    %v1089 = vpack.c.b16 %v999, %v994
    %v1090 = vpack.c.b16 %v1000, %v995
    %v1091 = vpack.c.b16 %v1001, %v996
    %v1092 = vpack.c.b16 %v1002, %v997
    %v1093 = vpack.c.b16 %v1003, %v998
    %v1094 = vpack.c.b16 %v1009, %v1004
    %v1095 = vpack.c.b16 %v1010, %v1005
    %v1096 = vpack.c.b16 %v1011, %v1006
    %v1097 = vpack.c.b16 %v1012, %v1007
    %v1098 = vpack.c.b16 %v1013, %v1008
    %v1099 = vpack.c.b16 %v1019, %v1014
    %v1100 = vpack.c.b16 %v1020, %v1015
    %v1101 = vpack.c.b16 %v1021, %v1016
    %v1102 = vpack.c.b16 %v1022, %v1017
    %v1103 = vpack.c.b16 %v1023, %v1018
    %1184 = vmatprep.subr.bf16.mxu0 %v1025
    %1185 = vmatpush1.bf16.msra.mxu0 %v1024
    %1186 = vmatprep.subr.bf16.mxu0 %v1030
    %1187 = vmatpush1.bf16.msra.mxu0 %v1029
    %1188 = vmatprep.subr.bf16.mxu0 %v1035
    %1189 = vmatpush1.bf16.msra.mxu0 %v1034
    %1190 = vmatprep.subr.bf16.mxu0 %v1040
    %1191 = vmatpush1.bf16.msra.mxu0 %v1039
    %1192 = vmatprep.subr.bf16.mxu0 %v1045
    %1193 = vmatpush1.bf16.msra.mxu0 %v1044
    %1194 = vmatprep.subr.bf16.mxu0 %v1050
    %1195 = vmatpush1.bf16.msra.mxu0 %v1049
    %1196 = vmatprep.subr.bf16.mxu0 %v1055
    %1197 = vmatpush1.bf16.msra.mxu0 %v1054
    %1198 = vmatprep.subr.bf16.mxu0 %v1060
    %1199 = vmatpush1.bf16.msra.mxu0 %v1059
    %1200 = vmatprep.subr.bf16.mxu0 %v1065
    %1201 = vmatpush1.bf16.msra.mxu0 %v1064
    %1202 = vmatprep.subr.bf16.mxu0 %v1070
    %1203 = vmatpush1.bf16.msra.mxu0 %v1069
    %1204 = vmatprep.subr.bf16.mxu0 %v1075
    %1205 = vmatpush1.bf16.msra.mxu0 %v1074
    %1206 = vmatprep.subr.bf16.mxu0 %v1080
    %1207 = vmatpush1.bf16.msra.mxu0 %v1079
    %1208 = vmatprep.subr.bf16.mxu0 %v1085
    %1209 = vmatpush1.bf16.msra.mxu0 %v1084
    %1210 = vmatprep.subr.bf16.mxu0 %v1090
    %1211 = vmatpush1.bf16.msra.mxu0 %v1089
    %1212 = vmatprep.subr.bf16.mxu0 %v1095
    %1213 = vmatpush1.bf16.msra.mxu0 %v1094
    %1214 = vmatprep.subr.bf16.mxu0 %v1100
    %1215 = vmatpush1.bf16.msra.mxu0 %v1099
    %1216 = vmatprep.mubr.bf16.mxu0 %v645
    %1217 = vmatmul.mubr.bf16.gmra.mrb[0].mxu0 %v644
    %v1218 = vpop.f32.mrb[0].mxu0
    %v1219 = vadd.f32 %v746, %v1218
    %v1220 = vpop.f32.mrb[0].mxu0
    %v1221 = vadd.f32 %v750, %v1220
    %v1222 = vpop.f32.mrb[0].mxu0
    %v1223 = vpop.f32.mrb[0].mxu0
    %1224 = vdwg.mxu0
    %1225 = vmatprep.subr.bf16.mxu0 %v1027
    %1226 = vmatpush1.bf16.msra.mxu0 %v1026
    %1227 = vmatprep.subr.bf16.mxu0 %v1032
    %1228 = vmatpush1.bf16.msra.mxu0 %v1031
    %1229 = vmatprep.subr.bf16.mxu0 %v1037
    %1230 = vmatpush1.bf16.msra.mxu0 %v1036
    %1231 = vmatprep.subr.bf16.mxu0 %v1042
    %1232 = vmatpush1.bf16.msra.mxu0 %v1041
    %1233 = vmatprep.subr.bf16.mxu0 %v1047
    %1234 = vmatpush1.bf16.msra.mxu0 %v1046
    %1235 = vmatprep.subr.bf16.mxu0 %v1052
    %1236 = vmatpush1.bf16.msra.mxu0 %v1051
    %1237 = vmatprep.subr.bf16.mxu0 %v1057
    %1238 = vmatpush1.bf16.msra.mxu0 %v1056
    %1239 = vmatprep.subr.bf16.mxu0 %v1062
    %1240 = vmatpush1.bf16.msra.mxu0 %v1061
    %1241 = vmatprep.subr.bf16.mxu0 %v1067
    %1242 = vmatpush1.bf16.msra.mxu0 %v1066
    %1243 = vmatprep.subr.bf16.mxu0 %v1072
    %1244 = vmatpush1.bf16.msra.mxu0 %v1071
    %1245 = vmatprep.subr.bf16.mxu0 %v1077
    %1246 = vmatpush1.bf16.msra.mxu0 %v1076
    %1247 = vmatprep.subr.bf16.mxu0 %v1082
    %1248 = vmatpush1.bf16.msra.mxu0 %v1081
    %1249 = vmatprep.subr.bf16.mxu0 %v1087
    %1250 = vmatpush1.bf16.msra.mxu0 %v1086
    %1251 = vmatprep.subr.bf16.mxu0 %v1092
    %1252 = vmatpush1.bf16.msra.mxu0 %v1091
    %1253 = vmatprep.subr.bf16.mxu0 %v1097
    %1254 = vmatpush1.bf16.msra.mxu0 %v1096
    %1255 = vmatprep.subr.bf16.mxu0 %v1102
    %1256 = vmatpush1.bf16.msra.mxu0 %v1101
    %1257 = vmatprep.mubr.bf16.mxu0 %v645
    %1258 = vmatmul.mubr.bf16.gmra.mrb[0].mxu0 %v644
    %v1259 = vpop.f32.mrb[0].mxu0
    %v1260 = vadd.f32 %v754, %v1259
    %v1261 = vpop.f32.mrb[0].mxu0
    %v1262 = vadd.f32 %v758, %v1261
    %v1263 = vpop.f32.mrb[0].mxu0
    %v1264 = vpop.f32.mrb[0].mxu0
    %1265 = vdwg.mxu0
    %1266 = vmatprep.subr.bf16.mxu0 0
    %1267 = vmatpush1.bf16.msra.mxu0 %v1028
    %1268 = vmatprep.subr.bf16.mxu0 0
    %1269 = vmatpush1.bf16.msra.mxu0 %v1033
    %1270 = vmatprep.subr.bf16.mxu0 0
    %1271 = vmatpush1.bf16.msra.mxu0 %v1038
    %1272 = vmatprep.subr.bf16.mxu0 0
    %1273 = vmatpush1.bf16.msra.mxu0 %v1043
    %1274 = vmatprep.subr.bf16.mxu0 0
    %1275 = vmatpush1.bf16.msra.mxu0 %v1048
    %1276 = vmatprep.subr.bf16.mxu0 0
    %1277 = vmatpush1.bf16.msra.mxu0 %v1053
    %1278 = vmatprep.subr.bf16.mxu0 0
    %1279 = vmatpush1.bf16.msra.mxu0 %v1058
    %1280 = vmatprep.subr.bf16.mxu0 0
    %1281 = vmatpush1.bf16.msra.mxu0 %v1063
    %1282 = vmatprep.subr.bf16.mxu0 0
    %1283 = vmatpush1.bf16.msra.mxu0 %v1068
    %1284 = vmatprep.subr.bf16.mxu0 0
    %1285 = vmatpush1.bf16.msra.mxu0 %v1073
    %1286 = vmatprep.subr.bf16.mxu0 0
    %1287 = vmatpush1.bf16.msra.mxu0 %v1078
    %1288 = vmatprep.subr.bf16.mxu0 0
    %1289 = vmatpush1.bf16.msra.mxu0 %v1083
    %1290 = vmatprep.subr.bf16.mxu0 0
    %1291 = vmatpush1.bf16.msra.mxu0 %v1088
    %1292 = vmatprep.subr.bf16.mxu0 0
    %1293 = vmatpush1.bf16.msra.mxu0 %v1093
    %1294 = vmatprep.subr.bf16.mxu0 0
    %1295 = vmatpush1.bf16.msra.mxu0 %v1098
    %1296 = vmatprep.subr.bf16.mxu0 0
    %1297 = vmatpush1.bf16.msra.mxu0 %v1103
    %1298 = vmatprep.mubr.bf16.mxu0 %v645
    %1299 = vmatmul.mubr.bf16.gmra.mrb[0].mxu0 %v644
    %v1300 = vpop.f32.mrb[0].mxu0
    %v1301 = vadd.f32 %v762, %v1300
    %v1302 = vpop.f32.mrb[0].mxu0
    %v1303 = vpop.f32.mrb[0].mxu0
    %v1304 = vpop.f32.mrb[0].mxu0
    %1305 = vdwg.mxu0
    %v1311 = vcombine.low %v1219, %v1221
    %v1312 = vcombine.low %v1260, %v1262
    %v1314 = vunpack.c.l.s4 1983009808
    %v1315 = vunpack.c.0.s8 %v1314
    %v1316 = vlaneseq
    %v1317 = vshrl.u32 %v1316, 7
    %v1318 = vsub.s32 %v1315, %v1317
    %v1319 = vrot.slane %v1311, %v1318
    %v1321 = vunpack.c.l.s4 1983009808
    %v1322 = vunpack.c.0.s8 %v1321
    %v1323 = vlaneseq
    %v1324 = vshrl.u32 %v1323, 7
    %v1325 = vsub.s32 %v1322, %v1324
    %v1326 = vrot.slane %v1312, %v1325
    %v1327 = vcombine.low %v1319, %v1326
    %v1329 = vunpack.c.l.s4 1983009808
    %v1330 = vunpack.c.0.s8 %v1329
    %v1331 = vlaneseq
    %v1332 = vshrl.u32 %v1331, 7
    %v1333 = vsub.s32 %v1330, %v1332
    %v1334 = vrot.slane %v1301, %v1333
    %1337 = vst [vmem:[%s10] sm:$0xff] %v1327
    %1338 = vst [vmem:[%s10 + $0x8] sm:$0x3] %v1334
    // Predicated region
    $region38: #{model_forward.1} parent=1 // pred_check
      _
    $region39: #{model_forward.1} parent=1 // pred_check_branch
      %1340 = sbr.rel (0) target = $region41
    $region40: #{model_forward.1} parent=1 // pred_region
      _
    $region41: #{model_forward.1} parent=1 // pred_fallthru
      _
    // Predicated region
    $region42: #{model_forward.1} parent=1 // pred_check
      _
    $region43: #{model_forward.1} parent=1 // pred_check_branch
      %1342 = sbr.rel (0) target = $region45
    $region44: #{model_forward.1} parent=1 // pred_region
      _
    $region45: #{model_forward.1} parent=1 // pred_fallthru
      _
    // Predicated region
    $region46: #{model_forward.1} parent=1 // pred_check
      _
    $region47: #{model_forward.1} parent=1 // pred_check_branch
      %1344 = sbr.rel (0) target = $region49
    $region48: #{model_forward.1} parent=1 // pred_region
      _
    $region49: #{model_forward.1} parent=1 // pred_fallthru
      _
    // Predicated region
    $region50: #{model_forward.1} parent=1 // pred_check
      _
    $region51: #{model_forward.1} parent=1 // pred_check_branch
      %1346 = sbr.rel (0) target = $region53
    $region52: #{model_forward.1} parent=1 // pred_region
      _
    $region53: #{model_forward.1} parent=1 // pred_fallthru
      _
    // Predicated region
    $region54: #{model_forward.1} parent=1 // pred_check
      _
    $region55: #{model_forward.1} parent=1 // pred_check_branch
      %1348 = sbr.rel (0) target = $region57
    $region56: #{model_forward.1} parent=1 // pred_region
      _
    $region57: #{model_forward.1} parent=1 // pred_fallthru
      _
    // Predicated region
    $region58: #{model_forward.1} parent=1 // pred_check
      _
    $region59: #{model_forward.1} parent=1 // pred_check_branch
      %1350 = sbr.rel (0) target = $region61
    $region60: #{model_forward.1} parent=1 // pred_region
      _
    $region61: #{model_forward.1} parent=1 // pred_fallthru
      _
    %1351 = vsyncpa [#allocation4], 1

</llo_original>
